<compile_context>
chip_gen: v7x
topology: tpu7x:2x2x1
jax: 0.10.0
libtpu: 0.0.40
codegen_flags: <defaults>
</compile_context>

<pallas_src>
import functools

import jax
import jax.numpy as jnp
from jax.experimental import pallas as pl
from jax.experimental.pallas import tpu as pltpu

_LANES = 128


def _round_up(x, m):
    return -(-x // m) * m


def _cdiv(a, b):
    return -(-a // b)


def _pick_tiling(tile_rows):
    """Tile rows (multiple of 64) and VMEM limit keyed off the chip generation."""
    vmem_cap = 0
    try:
        vmem_cap = int(getattr(pltpu.get_tpu_info(), "vmem_capacity_bytes", 0) or 0)
    except Exception:
        vmem_cap = 0
    big_vmem = vmem_cap >= 100 * 1024 * 1024          # v5e / v6e: 128 MiB VMEM
    if tile_rows is None:
        tile_rows = 4096 if big_vmem else 2048        # conservative on v7x / unknown
    tr_cfg = max(64, _round_up(int(tile_rows), 64))
    vmem_limit = (64 if big_vmem else 32) * 1024 * 1024
    return tr_cfg, vmem_limit


def _loss_elems(x, y, gamma, alpha):
    """Plain-jnp per-element QFocal loss (ragged tail + reference)."""
    x = x.astype(jnp.float32)
    y = y.astype(jnp.float32)
    bce = jnp.maximum(x, 0.0) - x * y + jnp.log1p(jnp.exp(-jnp.abs(x)))
    p = jax.nn.sigmoid(x)
    af = y * alpha + (1.0 - y) * (1.0 - alpha)
    mf = jnp.abs(y - p) ** gamma
    return bce * af * mf


def _qfocal_kernel(pred_ref, true_ref, out_ref, *, gamma, alpha, tile_rows,
                   acc_rows, blocks_per_split, last_block, rows_in_last,
                   mask_last, check_valid):
    c = pl.program_id(0)                     # split (TensorCore) index
    i = pl.program_id(1)                     # row-block index within the split
    g = c * blocks_per_split + i             # global row-block index

    # Output block index is constant over i -> out_ref is the resident
    # per-split accumulator (written back to HBM once per split).
    @pl.when(i == 0)
    def _init():
        out_ref[...] = jnp.zeros_like(out_ref)

    x = pred_ref[...].astype(jnp.float32)
    y = true_ref[...].astype(jnp.float32)

    # One exp per element, shared by the BCE log term and the sigmoid.
    ax = jnp.abs(x)
    e = jnp.exp(-ax)                                      # exp(-|x|)   (EUP)
    one_pe = 1.0 + e
    bce = jnp.maximum(x, 0.0) - x * y + jnp.log(one_pe)   # stable BCE-with-logits
    pred_prob = jnp.where(x >= 0.0, 1.0, e) * pl.reciprocal(one_pe, approx=False)

    # Folded alpha factor: y*a + (1-y)*(1-a) == y*(2a-1) + (1-a).
    alpha_factor = y * (2.0 * alpha - 1.0) + (1.0 - alpha)

    ad = jnp.abs(y - pred_prob)
    gm = float(gamma)
    if gm == 1.5:
        modulating = ad * jnp.sqrt(ad)                    # |d|^1.5 without pow
    elif gm == 2.0:
        modulating = ad * ad
    elif gm == 1.0:
        modulating = ad
    elif gm.is_integer():
        modulating = ad ** int(gm)
    else:
        safe = jnp.where(ad > 0.0, ad, 1.0)               # guard 0**frac NaN path
        modulating = jnp.where(ad > 0.0, jnp.power(safe, gm), 0.0)

    loss = bce * alpha_factor * modulating

    def _accumulate(v):
        # Wide vreg-shaped partial accumulation: pure VPU adds with ILP across
        # acc_rows sublanes; single cross-lane collapse happens in the wrapper.
        out_ref[...] += v.reshape(tile_rows // acc_rows, acc_rows, _LANES).sum(axis=0)

    if mask_last:
        # Only the final global block is ragged: pay the iota/compare/select
        # exactly once, accumulate unmasked on all other steps. Blocks with
        # g > last_block (odd split remainder, clamped in the index_map) are
        # skipped by both branches.
        @pl.when(g < last_block)
        def _body():
            _accumulate(loss)

        @pl.when(g == last_block)
        def _tail_block():
            ridx = jax.lax.broadcasted_iota(jnp.int32, loss.shape, 0)
            _accumulate(jnp.where(ridx < rows_in_last, loss, 0.0))
    else:
        if check_valid:
            @pl.when(g <= last_block)
            def _body():
                _accumulate(loss)
        else:
            _accumulate(loss)


def qfocal_loss(pred, true, *, gamma=1.5, alpha=0.25, reduction="mean",
                tile_rows=None):
    """QFocalLoss forward. pred/true: same-shape float arrays (any layout).

    reduction: 'mean' (BCEWithLogitsLoss default) or 'sum'.
    """
    assert pred.shape == true.shape
    # TODO(synk): reduction='none' (unreduced elementwise output) not implemented.
    assert reduction in ("mean", "sum")

    total = int(pred.size)
    p_flat = pred.reshape(-1)
    t_flat = true.reshape(-1)

    rows = total // _LANES
    rows_main = (rows // 8) * 8               # 8-aligned rows streamed by the kernel
    main = rows_main * _LANES

    # Ragged tail (< 8*128 + 128 elements): plain jnp, no pad/copy of the inputs.
    tail_sum = jnp.float32(0.0)
    if main < total:
        tail_sum = jnp.sum(_loss_elems(p_flat[main:], t_flat[main:], gamma, alpha))

    main_sum = jnp.float32(0.0)
    if rows_main > 0:
        tr_cfg, vmem_limit = _pick_tiling(tile_rows)
        if rows_main >= tr_cfg:
            tr, acc_rows = tr_cfg, 64
        else:
            tr = rows_main                     # single block == full extent
            acc_rows = 64 if rows_main % 64 == 0 else 8
        total_blocks = _cdiv(rows_main, tr)
        rows_in_last = rows_main - (total_blocks - 1) * tr
        nsplit = 2 if total_blocks >= 2 else 1     # one stream per TensorCore (v7x)
        bpc = _cdiv(total_blocks, nsplit)
        check_valid = (nsplit * bpc) != total_blocks

        # Free reshape when total % 128 == 0 (the common case); otherwise a
        # single slice of the aligned prefix — never a full padded copy.
        p2 = p_flat[:main].reshape(rows_main, _LANES)
        t2 = t_flat[:main].reshape(rows_main, _LANES)

        if check_valid:
            def in_map(c, i):
                return (jnp.minimum(c * bpc + i, total_blocks - 1), 0)
        else:
            def in_map(c, i):
                return (c * bpc + i, 0)

        kernel = functools.partial(
            _qfocal_kernel, gamma=float(gamma), alpha=float(alpha),
            tile_rows=tr, acc_rows=acc_rows, blocks_per_split=bpc,
            last_block=total_blocks - 1, rows_in_last=rows_in_last,
            mask_last=(rows_in_last != tr), check_valid=check_valid)

        partials = pl.pallas_call(
            kernel,
            out_shape=jax.ShapeDtypeStruct((nsplit, acc_rows, _LANES), jnp.float32),
            grid_spec=pltpu.PrefetchScalarGridSpec(
                num_scalar_prefetch=0,
                grid=(nsplit, bpc),
                in_specs=[
                    pl.BlockSpec((tr, _LANES), in_map),
                    pl.BlockSpec((tr, _LANES), in_map),
                ],
                # Lane-dense per-split accumulator slab; leading dim squeezed.
                out_specs=pl.BlockSpec((None, acc_rows, _LANES),
                                       lambda c, i: (c, 0, 0)),
            ),
            compiler_params=pltpu.CompilerParams(
                dimension_semantics=("parallel", "arbitrary"),
                vmem_limit_bytes=vmem_limit,
            ),
        )(p2, t2)
        main_sum = jnp.sum(partials)           # single cross-lane collapse, once

    loss_sum = main_sum + tail_sum
    if reduction == "mean":
        return loss_sum / jnp.float32(total)
    return loss_sum


def qfocal_loss_ref(pred, true, *, gamma=1.5, alpha=0.25, reduction="mean"):
    loss = _loss_elems(pred.reshape(-1), true.reshape(-1), gamma, alpha)
    return jnp.mean(loss) if reduction == "mean" else jnp.sum(loss)


if __name__ == "__main__":
    key = jax.random.PRNGKey(0)
    k1, k2, k3, k4 = jax.random.split(key, 4)

    # NCHW: batch=2, channels=4, spatial=16x16 (2048 elems -> 16 lane-rows).
    shape = (2, 4, 16, 16)
    pred = jax.random.normal(k1, shape, dtype=jnp.float32)
    true = jax.random.uniform(k2, shape, dtype=jnp.float32)   # soft (IoU-style) labels

    out = jax.block_until_ready(qfocal_loss(pred, true, gamma=1.5, alpha=0.25))
    ref = qfocal_loss_ref(pred, true, gamma=1.5, alpha=0.25)
    assert jnp.allclose(out, ref, rtol=1e-3, atol=1e-6), (out, ref)

    # Extra check: multi-block stream, 2-way parallel split, ragged last block
    # (row mask on final step only) and a <128-element jnp tail.
    shape2 = (5, 2263)                         # 11315 elems = 88 rows + 51 tail
    pred2 = jax.random.normal(k3, shape2, dtype=jnp.float32)
    true2 = jax.random.uniform(k4, shape2, dtype=jnp.float32)
    out2 = jax.block_until_ready(qfocal_loss(pred2, true2, tile_rows=64))
    ref2 = qfocal_loss_ref(pred2, true2)
    assert jnp.allclose(out2, ref2, rtol=1e-3, atol=1e-6), (out2, ref2)

    print("KERNEL_OK")
</pallas_src>

<mosaic_0001>
module attributes {stable_mosaic.version = 11 : i64} {
  func.func @_qfocal_kernel(%arg0: i32, %arg1: i32, %arg2: memref<16x128xf32, #tpu.memory_space<vmem>>, %arg3: memref<16x128xf32, #tpu.memory_space<vmem>>, %arg4: memref<1x8x128xf32, #tpu.memory_space<vmem>>) attributes {dimension_semantics = [#tpu.dimension_semantics<parallel>, #tpu.dimension_semantics<arbitrary>], iteration_bounds = array<i64: 1, 1>, scalar_prefetch = 0 : i64, scratch_operands = 0 : i64, tpu.core_type = #tpu.core_type<tc>, window_params = [{transform_indices = @transform_0, window_bounds = array<i64: 16, 128>}, {transform_indices = @transform_1, window_bounds = array<i64: 16, 128>}, {transform_indices = @transform_2, window_bounds = array<i64: 1, 8, 128>}]} {
    %c0_i32 = arith.constant 0 : i32
    %0 = arith.cmpi eq, %arg1, %c0_i32 : i32
    %1 = arith.extui %0 : i1 to i32
    %c0_i32_0 = arith.constant 0 : i32
    %2 = arith.cmpi ne, %1, %c0_i32_0 : i32
    scf.if %2 {
      %cst_17 = arith.constant 0.000000e+00 : f32
      %41 = vector.broadcast %cst_17 : f32 to vector<8x128xf32>
      %c0_18 = arith.constant 0 : index
      %c0_19 = arith.constant 0 : index
      %c0_20 = arith.constant 0 : index
      %42 = vector.load %arg4[%c0_18, %c0_19, %c0_20] : memref<1x8x128xf32, #tpu.memory_space<vmem>>, vector<1x8x128xf32>
      %43 = vector.shape_cast %42 : vector<1x8x128xf32> to vector<8x128xf32>
      %44 = vector.shape_cast %41 : vector<8x128xf32> to vector<1x8x128xf32>
      tpu.vector_store %arg4[%c0_18, %c0_19, %c0_20], %44 {strides = array<i32>} : memref<1x8x128xf32, #tpu.memory_space<vmem>>, vector<1x8x128xf32>,
    } else {
    }
    %c0 = arith.constant 0 : index
    %c0_1 = arith.constant 0 : index
    %3 = vector.load %arg2[%c0, %c0_1] : memref<16x128xf32, #tpu.memory_space<vmem>>, vector<16x128xf32>
    %c0_2 = arith.constant 0 : index
    %c0_3 = arith.constant 0 : index
    %4 = vector.load %arg3[%c0_2, %c0_3] : memref<16x128xf32, #tpu.memory_space<vmem>>, vector<16x128xf32>
    %5 = math.absf %3 : vector<16x128xf32>
    %cst = arith.constant 0.000000e+00 : f32
    %6 = vector.broadcast %cst : f32 to vector<16x128xf32>
    %7 = arith.subf %6, %5 : vector<16x128xf32>
    %8 = math.exp %7 : vector<16x128xf32>
    %cst_4 = arith.constant 1.000000e+00 : f32
    %9 = vector.broadcast %cst_4 : f32 to vector<16x128xf32>
    %10 = arith.addf %9, %8 : vector<16x128xf32>
    %cst_5 = arith.constant 0.000000e+00 : f32
    %11 = vector.broadcast %cst_5 : f32 to vector<16x128xf32>
    %12 = arith.maximumf %3, %11 : vector<16x128xf32>
    %13 = arith.mulf %3, %4 : vector<16x128xf32>
    %14 = arith.subf %12, %13 : vector<16x128xf32>
    %15 = math.log %10 : vector<16x128xf32>
    %16 = arith.addf %14, %15 : vector<16x128xf32>
    %cst_6 = arith.constant 0.000000e+00 : f32
    %17 = vector.broadcast %cst_6 : f32 to vector<16x128xf32>
    %18 = arith.cmpf oge, %3, %17 : vector<16x128xf32>
    %cst_7 = arith.constant 1.000000e+00 : f32
    %19 = vector.broadcast %cst_7 : f32 to vector<16x128xf32>
    %20 = arith.select %18, %19, %8 : vector<16x128xi1>, vector<16x128xf32>
    %21 = tpu.reciprocal %10 : vector<16x128xf32> -> vector<16x128xf32>
    %22 = arith.mulf %20, %21 : vector<16x128xf32>
    %cst_8 = arith.constant -5.000000e-01 : f32
    %23 = vector.broadcast %cst_8 : f32 to vector<16x128xf32>
    %24 = arith.mulf %4, %23 : vector<16x128xf32>
    %cst_9 = arith.constant 7.500000e-01 : f32
    %25 = vector.broadcast %cst_9 : f32 to vector<16x128xf32>
    %26 = arith.addf %24, %25 : vector<16x128xf32>
    %27 = arith.subf %4, %22 : vector<16x128xf32>
    %28 = math.absf %27 : vector<16x128xf32>
    %29 = math.sqrt %28 : vector<16x128xf32>
    %30 = arith.mulf %28, %29 : vector<16x128xf32>
    %31 = arith.mulf %16, %26 : vector<16x128xf32>
    %32 = arith.mulf %31, %30 : vector<16x128xf32>
    %c0_10 = arith.constant 0 : index
    %c0_11 = arith.constant 0 : index
    %c0_12 = arith.constant 0 : index
    %33 = vector.load %arg4[%c0_10, %c0_11, %c0_12] : memref<1x8x128xf32, #tpu.memory_space<vmem>>, vector<1x8x128xf32>
    %34 = vector.shape_cast %33 : vector<1x8x128xf32> to vector<8x128xf32>
    %35 = vector.shape_cast %32 : vector<16x128xf32> to vector<2x8x128xf32>
    %cst_13 = arith.constant dense<0.000000e+00> : vector<8x128xf32>
    %36 = vector.multi_reduction <add>, %35, %cst_13 [0] : vector<2x8x128xf32> to vector<8x128xf32>
    %37 = arith.addf %34, %36 : vector<8x128xf32>
    %c0_14 = arith.constant 0 : index
    %c0_15 = arith.constant 0 : index
    %c0_16 = arith.constant 0 : index
    %38 = vector.load %arg4[%c0_14, %c0_15, %c0_16] : memref<1x8x128xf32, #tpu.memory_space<vmem>>, vector<1x8x128xf32>
    %39 = vector.shape_cast %38 : vector<1x8x128xf32> to vector<8x128xf32>
    %40 = vector.shape_cast %37 : vector<8x128xf32> to vector<1x8x128xf32>
    tpu.vector_store %arg4[%c0_14, %c0_15, %c0_16], %40 {strides = array<i32>} : memref<1x8x128xf32, #tpu.memory_space<vmem>>, vector<1x8x128xf32>,
    return
  }
  func.func @transform_0(%arg0: i32, %arg1: i32) -> (i32, i32) {
    %c1_i32 = arith.constant 1 : i32
    %0 = arith.muli %arg0, %c1_i32 : i32
    %1 = arith.addi %0, %arg1 : i32
    %c0_i32 = arith.constant 0 : i32
    %c0_i32_0 = arith.constant 0 : i32
    return %1, %c0_i32 : i32, i32
  }
  func.func @transform_1(%arg0: i32, %arg1: i32) -> (i32, i32) {
    %c1_i32 = arith.constant 1 : i32
    %0 = arith.muli %arg0, %c1_i32 : i32
    %1 = arith.addi %0, %arg1 : i32
    %c0_i32 = arith.constant 0 : i32
    %c0_i32_0 = arith.constant 0 : i32
    return %1, %c0_i32 : i32, i32
  }
  func.func @transform_2(%arg0: i32, %arg1: i32) -> (i32, i32, i32) {
    %c0_i32 = arith.constant 0 : i32
    %c0_i32_0 = arith.constant 0 : i32
    %c0_i32_1 = arith.constant 0 : i32
    return %arg0, %c0_i32, %c0_i32_0 : i32, i32, i32
  }
}

</mosaic_0001>

<llo_original>
// kernel: tpu_custom_call.1
$region0: #{tpu_custom_call.1}
  #allocation0 [shape = 'u32[]', space=smem, size = 0x4, offset = 0x4, fixed_abs, tag = 'smem constant byte address 0x4 - core index']
  #allocation1 [shape = 'u32[144,128]{1,0:T(1,128)}', space=vmem, size = 0x12000, scoped, tag = 'internal scratch']
  %s0 = inlined_call_operand.hbm [shape: f32[16,128], index: 0, kind: input, shape index: {}]
  %s1 = inlined_call_operand.hbm [shape: f32[16,128], index: 1, kind: input, shape index: {}]
  %s2 = inlined_call_operand.hbm [shape: f32[1,8,128], index: 2, kind: output, shape index: {}]
  %s3 = sld [smem:[#allocation0]]
  $region30: #{tpu_custom_call.1} parent=0
    _
  %s5 = ssub.s32 1, %s3
  %s6 = scalar_select 0, %s5, %s3
  $region1: #{tpu_custom_call.1} parent=0
    #allocation2 [shape = 'u8[8192]{0}', space=vmem, size = 0x2000, scoped, tag = 'input window, operand 0, single buffered']
    #allocation3 [shape = 's32[1]{0}', space=sflag, size = 0x4, scoped, tag = 'scoped memory for tpu_custom_call.1']
    #allocation4 [shape = 's32[1]{0}', space=sflag, size = 0x4, scoped, tag = 'scoped memory for tpu_custom_call.1']
    #allocation5 [shape = 'u8[8192]{0}', space=vmem, size = 0x2000, scoped, tag = 'input window, operand 1, single buffered']
    #allocation6 [shape = 's32[1]{0}', space=sflag, size = 0x4, scoped, tag = 'scoped memory for tpu_custom_call.1']
    #allocation7 [shape = 'u8[4096]{0}', space=vmem, size = 0x1000, scoped, tag = 'output window, operand 0, single buffered']
    %7 = vsyncpa [#allocation3], 0
    %8 = vsyncpa [#allocation6], 0
    %9 = vsyncpa [#allocation4], 0
    // Predicated region
    $region2: #{tpu_custom_call.1} parent=1 // pred_check
      _
    $region3: #{tpu_custom_call.1} parent=1 // pred_check_branch
      %11 = sbr.rel (0) target = $region5
    $region4: #{tpu_custom_call.1} parent=1 // pred_region
      %s12 = sadd.s32 0, 0
      %s13 = smul.u32 2, %s12
      %s15 = ssub.s32 256, 256
      %16 = vsyncadd [#allocation3], %s15
      %s17 = smul.addr %s13, 128
      %s18 = scalar_lea.hbm %s0, %s17
      %s19 = sshll.u32 [#allocation2], 4
      %s20 = int_to_ptr.vmem [resolvable:$true] %s19
      %25 = dma.hbm_to_vmem [thread:$0]  %s18, 256, %s20, [#allocation3], 128, 128, 8
    $region5: #{tpu_custom_call.1} parent=1 // pred_fallthru
      _
    // Predicated region
    $region6: #{tpu_custom_call.1} parent=1 // pred_check
      _
    $region7: #{tpu_custom_call.1} parent=1 // pred_check_branch
      %27 = sbr.rel (0) target = $region9
    $region8: #{tpu_custom_call.1} parent=1 // pred_region
      %s28 = sadd.s32 0, 0
      %s29 = smul.u32 2, %s28
      %s31 = ssub.s32 256, 256
      %32 = vsyncadd [#allocation6], %s31
      %s33 = smul.addr %s29, 128
      %s34 = scalar_lea.hbm %s1, %s33
      %s35 = sshll.u32 [#allocation5], 4
      %s36 = int_to_ptr.vmem [resolvable:$true] %s35
      %41 = dma.hbm_to_vmem [thread:$0]  %s34, 256, %s36, [#allocation6], 128, 128, 8
    $region9: #{tpu_custom_call.1} parent=1 // pred_fallthru
      _
    // Predicated region
    $region10: #{tpu_custom_call.1} parent=1 // pred_check
      _
    $region11: #{tpu_custom_call.1} parent=1 // pred_check_branch
      %43 = sbr.rel (0) target = $region13
    $region12: #{tpu_custom_call.1} parent=1 // pred_region
      %44 = dma.done [#allocation3], 256
    $region13: #{tpu_custom_call.1} parent=1 // pred_fallthru
      _
    // Predicated region
    $region14: #{tpu_custom_call.1} parent=1 // pred_check
      _
    $region15: #{tpu_custom_call.1} parent=1 // pred_check_branch
      %46 = sbr.rel (0) target = $region17
    $region16: #{tpu_custom_call.1} parent=1 // pred_region
      %47 = dma.done [#allocation6], 256
    $region17: #{tpu_custom_call.1} parent=1 // pred_fallthru
      _
    %s48 = sadd.s32 0, 0
    %s49 = smul.u32 2, %s48
    %s50 = sadd.s32 0, 0
    %s51 = smul.u32 2, %s50
    %p52 = scmp.eq.s32.totalorder 0, 0
    // Predicated region
    $region18: #{tpu_custom_call.1} parent=1 // pred_check
      %p53 = pneg %p52
    $region19: #{tpu_custom_call.1} parent=1 // pred_check_branch
      %55 = sbr.rel (%p53) target = $region21
    $region20: #{tpu_custom_call.1} parent=1 // pred_region
      %56 = vst [vmem:[#allocation7] sm:$0xff] 0.0
    $region21: #{tpu_custom_call.1} parent=1 // pred_fallthru
      _
    %v57 = vld [vmem:[#allocation2] sm:$0xff]
    %v58 = vld [vmem:[#allocation2 + $0x8] sm:$0xff]
    %v59 = vld [vmem:[#allocation5] sm:$0xff]
    %v60 = vld [vmem:[#allocation5 + $0x8] sm:$0xff]
    %v61 = vand.u32 2147483647, %v57
    %v62 = vand.u32 2147483647, %v58
    %v63 = vsub.f32 0.0, %v61
    %v64 = vsub.f32 0.0, %v62
    %v65 = vmul.f32 %v63, 1.442695
    %v66 = vpow.pop %v65
    %v67 = vmul.f32 %v64, 1.442695
    %v68 = vpow.pop %v67
    %v69 = vadd.f32 %v66, 1.0
    %v70 = vadd.f32 %v68, 1.0
    %v71 = vmax.f32 %v57, 0.0
    %v72 = vmax.f32 %v58, 0.0
    %v73 = vmul.f32 %v57, %v59
    %v74 = vmul.f32 %v58, %v60
    %v75 = vsub.f32 %v71, %v73
    %v76 = vsub.f32 %v72, %v74
    %v77 = vlog2.pop %v69
    %v78 = vmul.f32 %v77, 0.6931472
    %v79 = vlog2.pop %v70
    %v80 = vmul.f32 %v79, 0.6931472
    %v81 = vadd.f32 %v75, %v78
    %v82 = vadd.f32 %v76, %v80
    %vm83 = vcmp.ge.f32.partialorder %v57, 0.0
    %vm84 = vcmp.ge.f32.partialorder %v58, 0.0
    %v85 = vsel %vm83, 1.0, %v66
    %v86 = vsel %vm84, 1.0, %v68
    %v87 = vrcp.pop %v69
    %v88 = vrcp.pop %v70
    %v89 = vmul.f32 %v85, %v87
    %v90 = vmul.f32 %v86, %v88
    %v91 = vmul.f32 %v59, -0.5
    %v92 = vmul.f32 %v60, -0.5
    %v93 = vadd.f32 %v91, 0.75
    %v94 = vadd.f32 %v92, 0.75
    %v95 = vsub.f32 %v59, %v89
    %v96 = vsub.f32 %v60, %v90
    %v97 = vand.u32 2147483647, %v95
    %v98 = vand.u32 2147483647, %v96
    %v99 = vrsqrt.pop %v97
    %v100 = vmul.f32 %v97, %v99
    %vm101 = vcmp.eq.f32.partialorder %v97, inf
    %v102 = vsel %vm101, %v97, %v100
    %vm103 = vcmp.eq.f32.partialorder %v97, 0.0
    %v104 = vand.u32 %v97, 2147483648
    %v105 = vsel %vm103, %v104, %v102
    %v106 = vrsqrt.pop %v98
    %v107 = vmul.f32 %v98, %v106
    %vm108 = vcmp.eq.f32.partialorder %v98, inf
    %v109 = vsel %vm108, %v98, %v107
    %vm110 = vcmp.eq.f32.partialorder %v98, 0.0
    %v111 = vand.u32 %v98, 2147483648
    %v112 = vsel %vm110, %v111, %v109
    %v113 = vmul.f32 %v97, %v105
    %v114 = vmul.f32 %v98, %v112
    %v115 = vmul.f32 %v81, %v93
    %v116 = vmul.f32 %v82, %v94
    %v117 = vmul.f32 %v115, %v113
    %v118 = vmul.f32 %v116, %v114
    %v119 = vld [vmem:[#allocation7] sm:$0xff]
    %v120 = vadd.f32 %v117, %v118
    %v121 = vadd.f32 %v119, %v120
    %122 = vst [vmem:[#allocation7] sm:$0xff] %v121
    // Predicated region
    $region22: #{tpu_custom_call.1} parent=1 // pred_check
      _
    $region23: #{tpu_custom_call.1} parent=1 // pred_check_branch
      %124 = sbr.rel (0) target = $region25
    $region24: #{tpu_custom_call.1} parent=1 // pred_region
      %s126 = ssub.s32 128, 128
      %127 = vsyncadd [#allocation4], %s126
      %s129 = sshll.u32 [#allocation7], 4
      %s130 = int_to_ptr.vmem [resolvable:$true] %s129
      %132 = dma.vmem_to_hbm [thread:$0]  %s130, 128, %s2, [#allocation4]
    $region25: #{tpu_custom_call.1} parent=1 // pred_fallthru
      _
    // Predicated region
    $region26: #{tpu_custom_call.1} parent=1 // pred_check
      _
    $region27: #{tpu_custom_call.1} parent=1 // pred_check_branch
      %134 = sbr.rel (0) target = $region29
    $region28: #{tpu_custom_call.1} parent=1 // pred_region
      %135 = dma.done [#allocation4], 128
    $region29: #{tpu_custom_call.1} parent=1 // pred_fallthru
      _
    %136 = vsyncpa [#allocation3], 1
    %137 = vsyncpa [#allocation6], 1
    %138 = vsyncpa [#allocation4], 1

</llo_original>
